<compile_context>
chip_gen: v5e
topology: v5e:2x2
jax: 0.10.0
libtpu: 0.0.40
codegen_flags: <defaults>
</compile_context>

<pallas_src>
import math
from functools import partial

import jax
import jax.numpy as jnp
from jax.experimental import pallas as pl
from jax.experimental.pallas import tpu as pltpu

# ---------------- model hyper-params (small, consistent with the module) -----
D_MODEL = 32          # d_model
NHEAD = 4             # nhead
HEAD_DIM = D_MODEL // NHEAD
DIM_FF = 64           # dim_feedforward
SEQ = 8               # L == S (residual to `src` requires query len == src len)
BATCH = 2
LN_EPS = 1e-5

# ---------------- packed parameter-slab layout: (_SLAB_ROWS, 3*E) fp32 -------
_W_QKV_ROW = 0                        # rows [0, E):        [wq*scale | wk | wv]
_WO_ROW = D_MODEL                     # rows [E, 2E):       wo in lanes [0, E)
_W1_ROW = 2 * D_MODEL                 # rows [2E, 3E):      w1 in lanes [0, F)
_W2_ROW = 3 * D_MODEL                 # rows [3E, 3E+F):    w2 in lanes [0, E)
_VEC_ROW = 3 * D_MODEL + DIM_FF       # 10 vector rows follow
(_BQ, _BK, _BV, _BO, _B1, _B2, _G1, _BE1, _G2, _BE2) = range(10)
_SLAB_ROWS = ((_VEC_ROW + 10 + 7) // 8) * 8        # 176 (sublane padded)
_SLAB_LANES = 3 * D_MODEL                          # 96


def _layer_norm(x, gamma, beta):
    mu = jnp.mean(x, axis=-1, keepdims=True)
    var = jnp.mean((x - mu) ** 2, axis=-1, keepdims=True)
    return (x - mu) * jax.lax.rsqrt(var + LN_EPS) * gamma + beta


def _encoder_layer_kernel(x_ref, p_ref, o_ref, *, nhead, head_dim, batch, seq):
    E = nhead * head_dim
    F = DIM_FF
    nl = batch * seq

    def vec(i, width=E):                       # (1, width) bias / LN row
        return p_ref[_VEC_ROW + i:_VEC_ROW + i + 1, 0:width]

    # ---- weights: static, sublane-aligned slices of the packed slab ----
    w_qkv = p_ref[_W_QKV_ROW:_W_QKV_ROW + E, :]          # (E, 3E)
    wo = p_ref[_WO_ROW:_WO_ROW + E, 0:E]                 # (E, E)
    w1 = p_ref[_W1_ROW:_W1_ROW + E, 0:F]                 # (E, F)
    w2 = p_ref[_W2_ROW:_W2_ROW + F, 0:E]                 # (F, E)

    x = x_ref[...].astype(jnp.float32)                   # (3*NL, E): [query|key|src] rows
    src = x[2 * nl:3 * nl, :]                            # value input carries the residual

    # ---- fused Q/K/V in-projection: ONE MXU push, aligned diagonal blocks ----
    proj = jnp.dot(x, w_qkv, preferred_element_type=jnp.float32)   # (3*NL, 3E)
    qp = proj[0:nl, 0:E] + vec(_BQ)                      # 1/sqrt(hd) pre-folded into wq/bq
    kp = proj[nl:2 * nl, E:2 * E] + vec(_BK)
    vp = proj[2 * nl:3 * nl, 2 * E:3 * E] + vec(_BV)

    # ---- head-batched attention: 2 batched matmuls over a (N*H) batch dim ----
    def to_heads(t):                                     # (NL, E) -> (H*N, L, hd)
        return jnp.concatenate(
            [t[:, h * head_dim:(h + 1) * head_dim].reshape(batch, seq, head_dim)
             for h in range(nhead)], axis=0)

    qb, kb, vb = to_heads(qp), to_heads(kp), to_heads(vp)
    s = jnp.einsum('bld,bsd->bls', qb, kb, preferred_element_type=jnp.float32)
    s = s - jnp.max(s, axis=-1, keepdims=True)
    pr = jnp.exp(s)
    pr = pr * pl.reciprocal(jnp.sum(pr, axis=-1, keepdims=True), approx=False)
    ob = jnp.einsum('bls,bsd->bld', pr, vb, preferred_element_type=jnp.float32)

    # ---- heads back to lanes in registers (no scratch, no masked stores) ----
    attn_rows = jnp.concatenate(
        [ob[h * batch:(h + 1) * batch].reshape(nl, head_dim) for h in range(nhead)],
        axis=-1)                                         # (NL, E), lanes ordered (h, d)

    # ---- single full-width out-projection (K = E) ----
    attn = jnp.dot(attn_rows, wo, preferred_element_type=jnp.float32) + vec(_BO)

    # ---- residual + LayerNorm 1 (dropout1 == identity at inference) ----
    x1 = _layer_norm(src + attn, vec(_G1), vec(_BE1))

    # ---- feed-forward: linear1 -> relu -> linear2 (dropouts == identity) ----
    h1 = jnp.maximum(
        jnp.dot(x1, w1, preferred_element_type=jnp.float32) + vec(_B1, F), 0.0)
    h2 = jnp.dot(h1, w2, preferred_element_type=jnp.float32) + vec(_B2)

    # ---- residual + LayerNorm 2 ----
    y = _layer_norm(x1 + h2, vec(_G2), vec(_BE2))
    o_ref[...] = y.astype(o_ref.dtype)


def pack_params(p):
    """Pack all weights/biases into one fp32 slab. Called ONCE at init (off hot path)."""
    E, F = D_MODEL, DIM_FF
    scale = 1.0 / math.sqrt(HEAD_DIM)
    slab = jnp.zeros((_SLAB_ROWS, _SLAB_LANES), jnp.float32)
    slab = slab.at[_W_QKV_ROW:_W_QKV_ROW + E, 0:E].set(p["wq"] * scale)
    slab = slab.at[_W_QKV_ROW:_W_QKV_ROW + E, E:2 * E].set(p["wk"])
    slab = slab.at[_W_QKV_ROW:_W_QKV_ROW + E, 2 * E:3 * E].set(p["wv"])
    slab = slab.at[_WO_ROW:_WO_ROW + E, 0:E].set(p["wo"])
    slab = slab.at[_W1_ROW:_W1_ROW + E, 0:F].set(p["w1"])
    slab = slab.at[_W2_ROW:_W2_ROW + F, 0:E].set(p["w2"])
    v = _VEC_ROW
    slab = slab.at[v + _BQ, 0:E].set(p["bq"][0] * scale)
    slab = slab.at[v + _BK, 0:E].set(p["bk"][0])
    slab = slab.at[v + _BV, 0:E].set(p["bv"][0])
    slab = slab.at[v + _BO, 0:E].set(p["bo"][0])
    slab = slab.at[v + _B1, 0:F].set(p["b1"][0])
    slab = slab.at[v + _B2, 0:E].set(p["b2"][0])
    slab = slab.at[v + _G1, 0:E].set(p["g1"][0])
    slab = slab.at[v + _BE1, 0:E].set(p["be1"][0])
    slab = slab.at[v + _G2, 0:E].set(p["g2"][0])
    slab = slab.at[v + _BE2, 0:E].set(p["be2"][0])
    return slab


@jax.jit
def transformer_encoder_layer_qkv(query, key, src, param_slab):
    """query/key/src: (L, N, E) seq-first, matching nn.MultiheadAttention default."""
    L, N, E = query.shape
    NL = N * L

    # fold to batch-major rows (row = n*L + l) and stack q/k/src into one (3*NL, E) ref
    to_rows = lambda t: jnp.transpose(t, (1, 0, 2)).reshape(NL, E)
    x_all = jnp.concatenate([to_rows(query), to_rows(key), to_rows(src)], axis=0)

    kernel = partial(_encoder_layer_kernel, nhead=NHEAD, head_dim=HEAD_DIM,
                     batch=N, seq=L)

    # TODO(synk): src_mask / src_key_padding_mask (None in the reference forward) not implemented.
    out = pl.pallas_call(
        kernel,
        out_shape=jax.ShapeDtypeStruct((NL, E), query.dtype),
    )(x_all, param_slab)

    return jnp.transpose(out.reshape(N, L, E), (1, 0, 2))    # back to (L, N, E)


# ----------------------------- pure-JAX reference -----------------------------
def _reference(query, key, src, p):
    def proj(x, w, b):
        return x @ w + b[0]
    q = proj(query, p["wq"], p["bq"])
    k = proj(key, p["wk"], p["bk"])
    v = proj(src, p["wv"], p["bv"])
    L, N, E = q.shape

    def split(x):  # (T, N, E) -> (N, H, T, hd)
        return x.reshape(x.shape[0], N, NHEAD, HEAD_DIM).transpose(1, 2, 0, 3)
    qh, kh, vh = split(q), split(k), split(v)
    s = jnp.einsum('nhld,nhsd->nhls', qh * (HEAD_DIM ** -0.5), kh)
    pattn = jax.nn.softmax(s, axis=-1)
    o = jnp.einsum('nhls,nhsd->nhld', pattn, vh)          # (N, H, L, hd)
    o = o.transpose(2, 0, 1, 3).reshape(L, N, E)
    attn = o @ p["wo"] + p["bo"][0]

    def ln(x, g, b):
        mu = x.mean(-1, keepdims=True)
        var = ((x - mu) ** 2).mean(-1, keepdims=True)
        return (x - mu) / jnp.sqrt(var + LN_EPS) * g[0] + b[0]

    x = ln(src + attn, p["g1"], p["be1"])
    h = jnp.maximum(x @ p["w1"] + p["b1"][0], 0.0)
    x2 = h @ p["w2"] + p["b2"][0]
    return ln(x + x2, p["g2"], p["be2"])


def _init_params(key):
    ks = jax.random.split(key, 8)
    n = lambda k, shape, s=0.05: (s * jax.random.normal(k, shape)).astype(jnp.float32)
    return {
        # projection weights stored as (in, out) so the kernel does x @ W + b
        "wq": n(ks[0], (D_MODEL, D_MODEL)), "wk": n(ks[1], (D_MODEL, D_MODEL)),
        "wv": n(ks[2], (D_MODEL, D_MODEL)), "wo": n(ks[3], (D_MODEL, D_MODEL)),
        "bq": n(ks[4], (1, D_MODEL)), "bk": n(ks[5], (1, D_MODEL)),
        "bv": n(ks[6], (1, D_MODEL)), "bo": jnp.zeros((1, D_MODEL), jnp.float32),
        "w1": n(ks[7], (D_MODEL, DIM_FF)), "b1": jnp.full((1, DIM_FF), 0.01, jnp.float32),
        "w2": n(jax.random.fold_in(key, 99), (DIM_FF, D_MODEL)),
        "b2": jnp.full((1, D_MODEL), -0.01, jnp.float32),
        "g1": jnp.ones((1, D_MODEL), jnp.float32), "be1": jnp.zeros((1, D_MODEL), jnp.float32),
        "g2": jnp.ones((1, D_MODEL), jnp.float32), "be2": jnp.zeros((1, D_MODEL), jnp.float32),
    }


if __name__ == "__main__":
    root = jax.random.PRNGKey(0)
    kq, kk, ksd, kp = jax.random.split(root, 4)

    # PyTorch MultiheadAttention seq-first layout: (L, N, E)
    query = jax.random.normal(kq, (SEQ, BATCH, D_MODEL), jnp.float32)
    key_in = jax.random.normal(kk, (SEQ, BATCH, D_MODEL), jnp.float32)
    src = jax.random.normal(ksd, (SEQ, BATCH, D_MODEL), jnp.float32)
    params = _init_params(kp)

    # parameter packing happens once here, outside the jitted per-call path
    param_slab = jax.block_until_ready(pack_params(params))

    out = transformer_encoder_layer_qkv(query, key_in, src, param_slab)
    out = jax.block_until_ready(out)

    ref = _reference(query, key_in, src, params)
    assert out.shape == (SEQ, BATCH, D_MODEL)
    err = float(jnp.max(jnp.abs(out - ref)))
    assert jnp.allclose(out, ref, atol=1e-3, rtol=1e-3), err
    print("KERNEL_OK")
</pallas_src>

<mosaic_0001>
module attributes {stable_mosaic.version = 11 : i64} {
  func.func @_encoder_layer_kernel(%arg0: memref<48x32xf32, #tpu.memory_space<vmem>>, %arg1: memref<176x96xf32, #tpu.memory_space<vmem>>, %arg2: memref<16x32xf32, #tpu.memory_space<vmem>>) attributes {dimension_semantics = [], scalar_prefetch = 0 : i64, scratch_operands = 0 : i64, tpu.core_type = #tpu.core_type<tc>} {
    %c0 = arith.constant 0 : index
    %c0_0 = arith.constant 0 : index
    %0 = vector.load %arg1[%c0, %c0_0] : memref<176x96xf32, #tpu.memory_space<vmem>>, vector<32x96xf32>
    %c32 = arith.constant 32 : index
    %c0_1 = arith.constant 0 : index
    %1 = vector.load %arg1[%c32, %c0_1] : memref<176x96xf32, #tpu.memory_space<vmem>>, vector<32x32xf32>
    %c64 = arith.constant 64 : index
    %c0_2 = arith.constant 0 : index
    %2 = vector.load %arg1[%c64, %c0_2] : memref<176x96xf32, #tpu.memory_space<vmem>>, vector<32x64xf32>
    %c96 = arith.constant 96 : index
    %c0_3 = arith.constant 0 : index
    %3 = vector.load %arg1[%c96, %c0_3] : memref<176x96xf32, #tpu.memory_space<vmem>>, vector<64x32xf32>
    %c0_4 = arith.constant 0 : index
    %c0_5 = arith.constant 0 : index
    %4 = vector.load %arg0[%c0_4, %c0_5] : memref<48x32xf32, #tpu.memory_space<vmem>>, vector<48x32xf32>
    %5 = vector.extract_strided_slice %4 {offsets = [32, 0], sizes = [16, 32], strides = [1, 1]} : vector<48x32xf32> to vector<16x32xf32>
    %cst = arith.constant dense<0.000000e+00> : vector<48x96xf32>
    %6 = tpu.matmul %4, %0, %cst {dimension_numbers = #tpu.dot_dimension_numbers<[1], [0], [0], [1], [0, 0, 1, 1], [], []>} : vector<48x32xf32>, vector<32x96xf32>, vector<48x96xf32> -> vector<48x96xf32>
    %7 = vector.extract_strided_slice %6 {offsets = [0, 0], sizes = [16, 32], strides = [1, 1]} : vector<48x96xf32> to vector<16x32xf32>
    %c160 = arith.constant 160 : index
    %c0_6 = arith.constant 0 : index
    %8 = vector.load %arg1[%c160, %c0_6] : memref<176x96xf32, #tpu.memory_space<vmem>>, vector<1x32xf32>
    %9 = vector.broadcast %8 : vector<1x32xf32> to vector<16x32xf32>
    %10 = arith.addf %7, %9 : vector<16x32xf32>
    %11 = vector.extract_strided_slice %6 {offsets = [16, 32], sizes = [16, 32], strides = [1, 1]} : vector<48x96xf32> to vector<16x32xf32>
    %c161 = arith.constant 161 : index
    %c0_7 = arith.constant 0 : index
    %12 = vector.load %arg1[%c161, %c0_7] : memref<176x96xf32, #tpu.memory_space<vmem>>, vector<1x32xf32>
    %13 = vector.broadcast %12 : vector<1x32xf32> to vector<16x32xf32>
    %14 = arith.addf %11, %13 : vector<16x32xf32>
    %15 = vector.extract_strided_slice %6 {offsets = [32, 64], sizes = [16, 32], strides = [1, 1]} : vector<48x96xf32> to vector<16x32xf32>
    %c162 = arith.constant 162 : index
    %c0_8 = arith.constant 0 : index
    %16 = vector.load %arg1[%c162, %c0_8] : memref<176x96xf32, #tpu.memory_space<vmem>>, vector<1x32xf32>
    %17 = vector.broadcast %16 : vector<1x32xf32> to vector<16x32xf32>
    %18 = arith.addf %15, %17 : vector<16x32xf32>
    %19 = vector.extract_strided_slice %10 {offsets = [0, 0], sizes = [16, 8], strides = [1, 1]} : vector<16x32xf32> to vector<16x8xf32>
    %20 = vector.shape_cast %19 : vector<16x8xf32> to vector<2x8x8xf32>
    %21 = vector.extract_strided_slice %10 {offsets = [0, 8], sizes = [16, 8], strides = [1, 1]} : vector<16x32xf32> to vector<16x8xf32>
    %22 = vector.shape_cast %21 : vector<16x8xf32> to vector<2x8x8xf32>
    %23 = vector.extract_strided_slice %10 {offsets = [0, 16], sizes = [16, 8], strides = [1, 1]} : vector<16x32xf32> to vector<16x8xf32>
    %24 = vector.shape_cast %23 : vector<16x8xf32> to vector<2x8x8xf32>
    %25 = vector.extract_strided_slice %10 {offsets = [0, 24], sizes = [16, 8], strides = [1, 1]} : vector<16x32xf32> to vector<16x8xf32>
    %26 = vector.shape_cast %25 : vector<16x8xf32> to vector<2x8x8xf32>
    %27 = tpu.concatenate %20, %22, %24, %26 in 0 : vector<2x8x8xf32>, vector<2x8x8xf32>, vector<2x8x8xf32>, vector<2x8x8xf32> -> vector<8x8x8xf32>
    %28 = vector.extract_strided_slice %14 {offsets = [0, 0], sizes = [16, 8], strides = [1, 1]} : vector<16x32xf32> to vector<16x8xf32>
    %29 = vector.shape_cast %28 : vector<16x8xf32> to vector<2x8x8xf32>
    %30 = vector.extract_strided_slice %14 {offsets = [0, 8], sizes = [16, 8], strides = [1, 1]} : vector<16x32xf32> to vector<16x8xf32>
    %31 = vector.shape_cast %30 : vector<16x8xf32> to vector<2x8x8xf32>
    %32 = vector.extract_strided_slice %14 {offsets = [0, 16], sizes = [16, 8], strides = [1, 1]} : vector<16x32xf32> to vector<16x8xf32>
    %33 = vector.shape_cast %32 : vector<16x8xf32> to vector<2x8x8xf32>
    %34 = vector.extract_strided_slice %14 {offsets = [0, 24], sizes = [16, 8], strides = [1, 1]} : vector<16x32xf32> to vector<16x8xf32>
    %35 = vector.shape_cast %34 : vector<16x8xf32> to vector<2x8x8xf32>
    %36 = tpu.concatenate %29, %31, %33, %35 in 0 : vector<2x8x8xf32>, vector<2x8x8xf32>, vector<2x8x8xf32>, vector<2x8x8xf32> -> vector<8x8x8xf32>
    %37 = vector.extract_strided_slice %18 {offsets = [0, 0], sizes = [16, 8], strides = [1, 1]} : vector<16x32xf32> to vector<16x8xf32>
    %38 = vector.shape_cast %37 : vector<16x8xf32> to vector<2x8x8xf32>
    %39 = vector.extract_strided_slice %18 {offsets = [0, 8], sizes = [16, 8], strides = [1, 1]} : vector<16x32xf32> to vector<16x8xf32>
    %40 = vector.shape_cast %39 : vector<16x8xf32> to vector<2x8x8xf32>
    %41 = vector.extract_strided_slice %18 {offsets = [0, 16], sizes = [16, 8], strides = [1, 1]} : vector<16x32xf32> to vector<16x8xf32>
    %42 = vector.shape_cast %41 : vector<16x8xf32> to vector<2x8x8xf32>
    %43 = vector.extract_strided_slice %18 {offsets = [0, 24], sizes = [16, 8], strides = [1, 1]} : vector<16x32xf32> to vector<16x8xf32>
    %44 = vector.shape_cast %43 : vector<16x8xf32> to vector<2x8x8xf32>
    %45 = tpu.concatenate %38, %40, %42, %44 in 0 : vector<2x8x8xf32>, vector<2x8x8xf32>, vector<2x8x8xf32>, vector<2x8x8xf32> -> vector<8x8x8xf32>
    "tpu.trace_start"() <{level = 10 : i32, message = "bld,bsd->bls"}> : () -> ()
    %cst_9 = arith.constant dense<0.000000e+00> : vector<8x8x8xf32>
    %46 = tpu.matmul %27, %36, %cst_9 {dimension_numbers = #tpu.dot_dimension_numbers<[2], [2], [1], [1], [0, 0, 0, 1, 1, 1], [0], [0]>} : vector<8x8x8xf32>, vector<8x8x8xf32>, vector<8x8x8xf32> -> vector<8x8x8xf32>
    "tpu.trace_stop"() : () -> ()
    %cst_10 = arith.constant dense<0xFF800000> : vector<8x8xf32>
    %47 = vector.multi_reduction <maximumf>, %46, %cst_10 [2] : vector<8x8x8xf32> to vector<8x8xf32>
    %48 = vector.shape_cast %47 : vector<8x8xf32> to vector<8x8x1xf32>
    %49 = vector.broadcast %48 : vector<8x8x1xf32> to vector<8x8x8xf32>
    %50 = arith.subf %46, %49 : vector<8x8x8xf32>
    %51 = math.exp %50 : vector<8x8x8xf32>
    %cst_11 = arith.constant dense<0.000000e+00> : vector<8x8xf32>
    %52 = vector.multi_reduction <add>, %51, %cst_11 [2] : vector<8x8x8xf32> to vector<8x8xf32>
    %53 = vector.shape_cast %52 : vector<8x8xf32> to vector<8x8x1xf32>
    %54 = tpu.reciprocal %53 : vector<8x8x1xf32> -> vector<8x8x1xf32>
    %55 = vector.broadcast %54 : vector<8x8x1xf32> to vector<8x8x8xf32>
    %56 = arith.mulf %51, %55 : vector<8x8x8xf32>
    "tpu.trace_start"() <{level = 10 : i32, message = "bls,bsd->bld"}> : () -> ()
    %cst_12 = arith.constant dense<0.000000e+00> : vector<8x8x8xf32>
    %57 = tpu.matmul %56, %45, %cst_12 {dimension_numbers = #tpu.dot_dimension_numbers<[2], [1], [1], [2], [0, 0, 0, 1, 1, 2], [0], [0]>} : vector<8x8x8xf32>, vector<8x8x8xf32>, vector<8x8x8xf32> -> vector<8x8x8xf32>
    "tpu.trace_stop"() : () -> ()
    %58 = vector.extract_strided_slice %57 {offsets = [0, 0, 0], sizes = [2, 8, 8], strides = [1, 1, 1]} : vector<8x8x8xf32> to vector<2x8x8xf32>
    %59 = vector.shape_cast %58 : vector<2x8x8xf32> to vector<16x8xf32>
    %60 = vector.extract_strided_slice %57 {offsets = [2, 0, 0], sizes = [2, 8, 8], strides = [1, 1, 1]} : vector<8x8x8xf32> to vector<2x8x8xf32>
    %61 = vector.shape_cast %60 : vector<2x8x8xf32> to vector<16x8xf32>
    %62 = vector.extract_strided_slice %57 {offsets = [4, 0, 0], sizes = [2, 8, 8], strides = [1, 1, 1]} : vector<8x8x8xf32> to vector<2x8x8xf32>
    %63 = vector.shape_cast %62 : vector<2x8x8xf32> to vector<16x8xf32>
    %64 = vector.extract_strided_slice %57 {offsets = [6, 0, 0], sizes = [2, 8, 8], strides = [1, 1, 1]} : vector<8x8x8xf32> to vector<2x8x8xf32>
    %65 = vector.shape_cast %64 : vector<2x8x8xf32> to vector<16x8xf32>
    %66 = tpu.concatenate %59, %61, %63, %65 in 1 : vector<16x8xf32>, vector<16x8xf32>, vector<16x8xf32>, vector<16x8xf32> -> vector<16x32xf32>
    %cst_13 = arith.constant dense<0.000000e+00> : vector<16x32xf32>
    %67 = tpu.matmul %66, %1, %cst_13 {dimension_numbers = #tpu.dot_dimension_numbers<[1], [0], [0], [1], [0, 0, 1, 1], [], []>} : vector<16x32xf32>, vector<32x32xf32>, vector<16x32xf32> -> vector<16x32xf32>
    %c163 = arith.constant 163 : index
    %c0_14 = arith.constant 0 : index
    %68 = vector.load %arg1[%c163, %c0_14] : memref<176x96xf32, #tpu.memory_space<vmem>>, vector<1x32xf32>
    %69 = vector.broadcast %68 : vector<1x32xf32> to vector<16x32xf32>
    %70 = arith.addf %67, %69 : vector<16x32xf32>
    %71 = arith.addf %5, %70 : vector<16x32xf32>
    %c166 = arith.constant 166 : index
    %c0_15 = arith.constant 0 : index
    %72 = vector.load %arg1[%c166, %c0_15] : memref<176x96xf32, #tpu.memory_space<vmem>>, vector<1x32xf32>
    %c167 = arith.constant 167 : index
    %c0_16 = arith.constant 0 : index
    %73 = vector.load %arg1[%c167, %c0_16] : memref<176x96xf32, #tpu.memory_space<vmem>>, vector<1x32xf32>
    %cst_17 = arith.constant dense<0.000000e+00> : vector<16xf32>
    %74 = vector.multi_reduction <add>, %71, %cst_17 [1] : vector<16x32xf32> to vector<16xf32>
    %75 = vector.shape_cast %74 : vector<16xf32> to vector<16x1xf32>
    %cst_18 = arith.constant 3.200000e+01 : f32
    %76 = vector.broadcast %cst_18 : f32 to vector<16x1xf32>
    %77 = arith.divf %75, %76 : vector<16x1xf32>
    %78 = vector.broadcast %77 : vector<16x1xf32> to vector<16x32xf32>
    %79 = arith.subf %71, %78 : vector<16x32xf32>
    %80 = arith.mulf %79, %79 : vector<16x32xf32>
    %cst_19 = arith.constant dense<0.000000e+00> : vector<16xf32>
    %81 = vector.multi_reduction <add>, %80, %cst_19 [1] : vector<16x32xf32> to vector<16xf32>
    %82 = vector.shape_cast %81 : vector<16xf32> to vector<16x1xf32>
    %cst_20 = arith.constant 3.200000e+01 : f32
    %83 = vector.broadcast %cst_20 : f32 to vector<16x1xf32>
    %84 = arith.divf %82, %83 : vector<16x1xf32>
    %85 = vector.broadcast %77 : vector<16x1xf32> to vector<16x32xf32>
    %86 = arith.subf %71, %85 : vector<16x32xf32>
    %cst_21 = arith.constant 9.99999974E-6 : f32
    %87 = vector.broadcast %cst_21 : f32 to vector<16x1xf32>
    %88 = arith.addf %84, %87 : vector<16x1xf32>
    %89 = math.rsqrt %88 : vector<16x1xf32>
    %90 = vector.broadcast %89 : vector<16x1xf32> to vector<16x32xf32>
    %91 = arith.mulf %86, %90 : vector<16x32xf32>
    %92 = vector.broadcast %72 : vector<1x32xf32> to vector<16x32xf32>
    %93 = arith.mulf %91, %92 : vector<16x32xf32>
    %94 = vector.broadcast %73 : vector<1x32xf32> to vector<16x32xf32>
    %95 = arith.addf %93, %94 : vector<16x32xf32>
    %cst_22 = arith.constant dense<0.000000e+00> : vector<16x64xf32>
    %96 = tpu.matmul %95, %2, %cst_22 {dimension_numbers = #tpu.dot_dimension_numbers<[1], [0], [0], [1], [0, 0, 1, 1], [], []>} : vector<16x32xf32>, vector<32x64xf32>, vector<16x64xf32> -> vector<16x64xf32>
    %c164 = arith.constant 164 : index
    %c0_23 = arith.constant 0 : index
    %97 = vector.load %arg1[%c164, %c0_23] : memref<176x96xf32, #tpu.memory_space<vmem>>, vector<1x64xf32>
    %98 = vector.broadcast %97 : vector<1x64xf32> to vector<16x64xf32>
    %99 = arith.addf %96, %98 : vector<16x64xf32>
    %cst_24 = arith.constant 0.000000e+00 : f32
    %100 = vector.broadcast %cst_24 : f32 to vector<16x64xf32>
    %101 = arith.maximumf %99, %100 : vector<16x64xf32>
    %cst_25 = arith.constant dense<0.000000e+00> : vector<16x32xf32>
    %102 = tpu.matmul %101, %3, %cst_25 {dimension_numbers = #tpu.dot_dimension_numbers<[1], [0], [0], [1], [0, 0, 1, 1], [], []>} : vector<16x64xf32>, vector<64x32xf32>, vector<16x32xf32> -> vector<16x32xf32>
    %c165 = arith.constant 165 : index
    %c0_26 = arith.constant 0 : index
    %103 = vector.load %arg1[%c165, %c0_26] : memref<176x96xf32, #tpu.memory_space<vmem>>, vector<1x32xf32>
    %104 = vector.broadcast %103 : vector<1x32xf32> to vector<16x32xf32>
    %105 = arith.addf %102, %104 : vector<16x32xf32>
    %106 = arith.addf %95, %105 : vector<16x32xf32>
    %c168 = arith.constant 168 : index
    %c0_27 = arith.constant 0 : index
    %107 = vector.load %arg1[%c168, %c0_27] : memref<176x96xf32, #tpu.memory_space<vmem>>, vector<1x32xf32>
    %c169 = arith.constant 169 : index
    %c0_28 = arith.constant 0 : index
    %108 = vector.load %arg1[%c169, %c0_28] : memref<176x96xf32, #tpu.memory_space<vmem>>, vector<1x32xf32>
    %cst_29 = arith.constant dense<0.000000e+00> : vector<16xf32>
    %109 = vector.multi_reduction <add>, %106, %cst_29 [1] : vector<16x32xf32> to vector<16xf32>
    %110 = vector.shape_cast %109 : vector<16xf32> to vector<16x1xf32>
    %cst_30 = arith.constant 3.200000e+01 : f32
    %111 = vector.broadcast %cst_30 : f32 to vector<16x1xf32>
    %112 = arith.divf %110, %111 : vector<16x1xf32>
    %113 = vector.broadcast %112 : vector<16x1xf32> to vector<16x32xf32>
    %114 = arith.subf %106, %113 : vector<16x32xf32>
    %115 = arith.mulf %114, %114 : vector<16x32xf32>
    %cst_31 = arith.constant dense<0.000000e+00> : vector<16xf32>
    %116 = vector.multi_reduction <add>, %115, %cst_31 [1] : vector<16x32xf32> to vector<16xf32>
    %117 = vector.shape_cast %116 : vector<16xf32> to vector<16x1xf32>
    %cst_32 = arith.constant 3.200000e+01 : f32
    %118 = vector.broadcast %cst_32 : f32 to vector<16x1xf32>
    %119 = arith.divf %117, %118 : vector<16x1xf32>
    %120 = vector.broadcast %112 : vector<16x1xf32> to vector<16x32xf32>
    %121 = arith.subf %106, %120 : vector<16x32xf32>
    %cst_33 = arith.constant 9.99999974E-6 : f32
    %122 = vector.broadcast %cst_33 : f32 to vector<16x1xf32>
    %123 = arith.addf %119, %122 : vector<16x1xf32>
    %124 = math.rsqrt %123 : vector<16x1xf32>
    %125 = vector.broadcast %124 : vector<16x1xf32> to vector<16x32xf32>
    %126 = arith.mulf %121, %125 : vector<16x32xf32>
    %127 = vector.broadcast %107 : vector<1x32xf32> to vector<16x32xf32>
    %128 = arith.mulf %126, %127 : vector<16x32xf32>
    %129 = vector.broadcast %108 : vector<1x32xf32> to vector<16x32xf32>
    %130 = arith.addf %128, %129 : vector<16x32xf32>
    %c0_34 = arith.constant 0 : index
    %c0_35 = arith.constant 0 : index
    %131 = vector.load %arg2[%c0_34, %c0_35] : memref<16x32xf32, #tpu.memory_space<vmem>>, vector<16x32xf32>
    tpu.vector_store %arg2[%c0_34, %c0_35], %130 {strides = array<i32>} : memref<16x32xf32, #tpu.memory_space<vmem>>, vector<16x32xf32>,
    return
  }
}

</mosaic_0001>

<llo_original>
// kernel: transformer_encoder_layer_qkv.1
$region0: #{transformer_encoder_layer_qkv.1}
  #allocation0 [shape = 'u32[]', space=smem, size = 0x4, offset = 0x4, fixed_abs, tag = 'smem constant byte address 0x4 - core index']
  #allocation1 [shape = 'u32[72,128]{1,0:T(1,128)}', space=vmem, size = 0x9000, scoped, tag = 'internal scratch']
  %s0 = inlined_call_operand.vmem [shape: f32[48,32], index: 0, kind: input, shape index: {}]
  %s1 = inlined_call_operand.hbm [shape: f32[176,96], index: 1, kind: input, shape index: {}]
  %s2 = inlined_call_operand.vmem [shape: f32[16,32], index: 2, kind: output, shape index: {}]
  %s3 = sld [smem:[#allocation0]]
  $region22: #{transformer_encoder_layer_qkv.1} parent=0
    _
  %s5 = ssub.s32 1, %s3
  %s6 = scalar_select 0, %s5, %s3
  $region1: #{transformer_encoder_layer_qkv.1} parent=0
    #allocation2 [shape = 'u8[90112]{0}', space=vmem, size = 0x16000, scoped, tag = 'input window, operand 1, single buffered']
    #allocation3 [shape = 's32[1]{0}', space=sflag, size = 0x4, scoped, tag = 'scoped memory for transformer_encoder_layer_qkv.1']
    %7 = vsyncpa [#allocation3], 0
    // Predicated region
    $region2: #{transformer_encoder_layer_qkv.1} parent=1 // pred_check
      _
    $region3: #{transformer_encoder_layer_qkv.1} parent=1 // pred_check_branch
      %9 = sbr.rel (0) target = $region5
    $region4: #{transformer_encoder_layer_qkv.1} parent=1 // pred_region
      _
    $region5: #{transformer_encoder_layer_qkv.1} parent=1 // pred_fallthru
      _
    // Predicated region
    $region6: #{transformer_encoder_layer_qkv.1} parent=1 // pred_check
      _
    $region7: #{transformer_encoder_layer_qkv.1} parent=1 // pred_check_branch
      %11 = sbr.rel (0) target = $region9
    $region8: #{transformer_encoder_layer_qkv.1} parent=1 // pred_region
      %13 = vsyncadd [#allocation3], 0
      %s14 = sshll.u32 %s1, 4
      %s15 = int_to_ptr.hbm [resolvable:$true] %s14
      %s16 = sshll.u32 [#allocation2], 4
      %s17 = int_to_ptr.vmem [resolvable:$true] %s16
      %22 = dma.hbm_to_vmem [thread:$0]  %s15, 2816, %s17, [#allocation3], 128, 128, 8
    $region9: #{transformer_encoder_layer_qkv.1} parent=1 // pred_fallthru
      _
    // Predicated region
    $region10: #{transformer_encoder_layer_qkv.1} parent=1 // pred_check
      _
    $region11: #{transformer_encoder_layer_qkv.1} parent=1 // pred_check_branch
      %24 = sbr.rel (0) target = $region13
    $region12: #{transformer_encoder_layer_qkv.1} parent=1 // pred_region
      %26 = dma.done [#allocation3], 2816
    $region13: #{transformer_encoder_layer_qkv.1} parent=1 // pred_fallthru
      _
    %v27 = vld [vmem:[#allocation2] sm:$0xff]
    %v28 = vld [vmem:[#allocation2 + $0x8] sm:$0xff]
    %v29 = vld [vmem:[#allocation2 + $0x10] sm:$0xff]
    %v30 = vld [vmem:[#allocation2 + $0x18] sm:$0xff]
    %v31 = vld [vmem:[#allocation2 + $0x20] sm:$0xff]
    %v32 = vld [vmem:[#allocation2 + $0x28] sm:$0xff]
    %v33 = vld [vmem:[#allocation2 + $0x30] sm:$0xff]
    %v34 = vld [vmem:[#allocation2 + $0x38] sm:$0xff]
    %v35 = vld [vmem:[#allocation2 + $0x40] sm:$0xff]
    %v36 = vld [vmem:[#allocation2 + $0x48] sm:$0xff]
    %v37 = vld [vmem:[#allocation2 + $0x50] sm:$0xff]
    %v38 = vld [vmem:[#allocation2 + $0x58] sm:$0xff]
    %v39 = vld [vmem:[#allocation2 + $0x60] sm:$0xff]
    %v40 = vld [vmem:[#allocation2 + $0x68] sm:$0xff]
    %v41 = vld [vmem:[#allocation2 + $0x70] sm:$0xff]
    %v42 = vld [vmem:[#allocation2 + $0x78] sm:$0xff]
    %v43 = vld [vmem:[#allocation2 + $0x80] sm:$0xff]
    %v44 = vld [vmem:[#allocation2 + $0x88] sm:$0xff]
    %v45 = vld [vmem:[#allocation2 + $0x90] sm:$0xff]
    %v46 = vld [vmem:[#allocation2 + $0x98] sm:$0xff]
    %v47 = vld [vmem:[%s0] sm:$0xff]
    %v48 = vld [vmem:[%s0 + $0x8] sm:$0xff]
    %v49 = vld [vmem:[%s0 + $0x10] sm:$0xff]
    %v50 = vld [vmem:[%s0 + $0x18] sm:$0xff]
    %v51 = vld [vmem:[%s0 + $0x20] sm:$0xff]
    %v52 = vld [vmem:[%s0 + $0x28] sm:$0xff]
    %vm53 = vcmask 261120
    %v55 = vsel %vm53, %v47, 0
    %v58 = vsel %vm53, %v48, 0
    %v61 = vsel %vm53, %v49, 0
    %v64 = vsel %vm53, %v50, 0
    %v67 = vsel %vm53, %v51, 0
    %v70 = vsel %vm53, %v52, 0
    %72 = vmatpush.msra.mxu0 0.0
    %73 = vmatpush.msra.mxu0 0.0
    %74 = vmatpush.msra.mxu0 0.0
    %75 = vmatpush.msra.mxu0 0.0
    %76 = vmatpush.msra.mxu0 0.0
    %77 = vmatpush.msra.mxu0 0.0
    %78 = vmatpush.msra.mxu0 0.0
    %79 = vmatpush.msra.mxu0 0.0
    %80 = vmatpush.msra.mxu0 0.0
    %81 = vmatpush.msra.mxu0 0.0
    %82 = vmatpush.msra.mxu0 0.0
    %83 = vmatpush.msra.mxu0 0.0
    %84 = vmatpush.msra.mxu0 %v30
    %85 = vmatpush.msra.mxu0 %v29
    %86 = vmatpush.msra.mxu0 %v28
    %87 = vmatpush.msra.mxu0 %v27
    %88 = vmatmul.f32.gmra.mxu0 %v55
    %v89 = vpop.f32.mrf.mxu0
    %v90 = vadd.f32 0.0, %v89
    %91 = vmatmul.f32.gmra.mxu0 %v58
    %v92 = vpop.f32.mrf.mxu0
    %v93 = vadd.f32 0.0, %v92
    %94 = vmatmul.f32.gmra.mxu0 %v61
    %v95 = vpop.f32.mrf.mxu0
    %v96 = vadd.f32 0.0, %v95
    %97 = vmatmul.f32.gmra.mxu0 %v64
    %v98 = vpop.f32.mrf.mxu0
    %v99 = vadd.f32 0.0, %v98
    %100 = vmatmul.f32.gmra.mxu0 %v67
    %v101 = vpop.f32.mrf.mxu0
    %v102 = vadd.f32 0.0, %v101
    %103 = vmatmul.f32.gmra.mxu0 %v70
    %v104 = vpop.f32.mrf.mxu0
    %v105 = vadd.f32 0.0, %v104
    %106 = vdwg.mxu0
    %v107 = vld [vmem:[#allocation2 + $0xa0] sm:$0x1]
    %v108 = vperm.slane %v107, 0
    %v109 = vadd.f32 %v90, %v108
    %v110 = vadd.f32 %v93, %v108
    %v111 = vld [vmem:[#allocation2 + $0xa1] sm:$0x1]
    %v112 = vperm.slane %v111, 0
    %114 = vrot.lane.b32.xlu0 %v112, 32
    %v115 = vpop.permute.xlu0 %114
    %v117 = vadd.f32 %v96, %v115
    %v118 = vadd.f32 %v99, %v115
    %v119 = vld [vmem:[#allocation2 + $0xa2] sm:$0x1]
    %v120 = vperm.slane %v119, 0
    %122 = vrot.lane.b32.xlu0 %v120, 64
    %v123 = vpop.permute.xlu0 %122
    %v125 = vadd.f32 %v102, %v123
    %v126 = vadd.f32 %v105, %v123
    %129 = vrot.lane.b32.xlu0 %v109, 120
    %v130 = vpop.permute.xlu0 %129
    %131 = vrot.lane.b32.xlu0 %v110, 120
    %v132 = vpop.permute.xlu0 %131
    %133 = vrot.lane.b32.xlu0 %v109, 112
    %v134 = vpop.permute.xlu0 %133
    %135 = vrot.lane.b32.xlu0 %v110, 112
    %v136 = vpop.permute.xlu0 %135
    %137 = vrot.lane.b32.xlu0 %v109, 104
    %v138 = vpop.permute.xlu0 %137
    %139 = vrot.lane.b32.xlu0 %v110, 104
    %v140 = vpop.permute.xlu0 %139
    %143 = vrot.lane.b32.xlu0 %v117, 120
    %v144 = vpop.permute.xlu0 %143
    %145 = vrot.lane.b32.xlu0 %v118, 120
    %v146 = vpop.permute.xlu0 %145
    %147 = vrot.lane.b32.xlu0 %v117, 112
    %v148 = vpop.permute.xlu0 %147
    %149 = vrot.lane.b32.xlu0 %v118, 112
    %v150 = vpop.permute.xlu0 %149
    %151 = vrot.lane.b32.xlu0 %v117, 104
    %v152 = vpop.permute.xlu0 %151
    %153 = vrot.lane.b32.xlu0 %v118, 104
    %v154 = vpop.permute.xlu0 %153
    %157 = vrot.lane.b32.xlu0 %v125, 120
    %v158 = vpop.permute.xlu0 %157
    %159 = vrot.lane.b32.xlu0 %v126, 120
    %v160 = vpop.permute.xlu0 %159
    %161 = vrot.lane.b32.xlu0 %v125, 112
    %v162 = vpop.permute.xlu0 %161
    %163 = vrot.lane.b32.xlu0 %v126, 112
    %v164 = vpop.permute.xlu0 %163
    %165 = vrot.lane.b32.xlu0 %v125, 104
    %v166 = vpop.permute.xlu0 %165
    %167 = vrot.lane.b32.xlu0 %v126, 104
    %v168 = vpop.permute.xlu0 %167
    %169 = vrot.lane.b32.xlu0 %v117, 96
    %v170 = vpop.permute.xlu0 %169
    %vm171 = vcmask 64512
    %v172 = vsel %vm171, %v109, 0
    %v174 = vsel %vm171, %v170, 0
    %176 = vmatpush.xpose.msra.mxu0 0.0
    %177 = vmatpush.xpose.msra.mxu0 0.0
    %178 = vmatpush.xpose.msra.mxu0 0.0
    %179 = vmatpush.xpose.msra.mxu0 0.0
    %180 = vmatpush.xpose.msra.mxu0 0.0
    %181 = vmatpush.xpose.msra.mxu0 0.0
    %182 = vmatpush.xpose.msra.mxu0 0.0
    %183 = vmatpush.xpose.msra.mxu0 0.0
    %184 = vmatpush.xpose.msra.mxu0 0.0
    %185 = vmatpush.xpose.msra.mxu0 0.0
    %186 = vmatpush.xpose.msra.mxu0 0.0
    %187 = vmatpush.xpose.msra.mxu0 0.0
    %188 = vmatpush.xpose.msra.mxu0 0.0
    %189 = vmatpush.xpose.msra.mxu0 0.0
    %190 = vmatpush.xpose.msra.mxu0 0.0
    %191 = vmatpush.xpose.msra.mxu0 %v174
    %192 = vmatmul.f32.gmra.mxu0 %v172
    %v193 = vpop.f32.mrf.mxu0
    %v194 = vadd.f32 0.0, %v193
    %195 = vdwg.mxu0
    %196 = vrot.lane.b32.xlu0 %v118, 96
    %v197 = vpop.permute.xlu0 %196
    %v198 = vsel %vm171, %v110, 0
    %v200 = vsel %vm171, %v197, 0
    %202 = vmatpush.xpose.msra.mxu0 0.0
    %203 = vmatpush.xpose.msra.mxu0 0.0
    %204 = vmatpush.xpose.msra.mxu0 0.0
    %205 = vmatpush.xpose.msra.mxu0 0.0
    %206 = vmatpush.xpose.msra.mxu0 0.0
    %207 = vmatpush.xpose.msra.mxu0 0.0
    %208 = vmatpush.xpose.msra.mxu0 0.0
    %209 = vmatpush.xpose.msra.mxu0 0.0
    %210 = vmatpush.xpose.msra.mxu0 0.0
    %211 = vmatpush.xpose.msra.mxu0 0.0
    %212 = vmatpush.xpose.msra.mxu0 0.0
    %213 = vmatpush.xpose.msra.mxu0 0.0
    %214 = vmatpush.xpose.msra.mxu0 0.0
    %215 = vmatpush.xpose.msra.mxu0 0.0
    %216 = vmatpush.xpose.msra.mxu0 0.0
    %217 = vmatpush.xpose.msra.mxu0 %v200
    %218 = vmatmul.f32.gmra.mxu0 %v198
    %v219 = vpop.f32.mrf.mxu0
    %v220 = vadd.f32 0.0, %v219
    %221 = vdwg.mxu0
    %222 = vrot.lane.b32.xlu0 %v144, 96
    %v223 = vpop.permute.xlu0 %222
    %v224 = vsel %vm171, %v130, 0
    %v226 = vsel %vm171, %v223, 0
    %228 = vmatpush.xpose.msra.mxu0 0.0
    %229 = vmatpush.xpose.msra.mxu0 0.0
    %230 = vmatpush.xpose.msra.mxu0 0.0
    %231 = vmatpush.xpose.msra.mxu0 0.0
    %232 = vmatpush.xpose.msra.mxu0 0.0
    %233 = vmatpush.xpose.msra.mxu0 0.0
    %234 = vmatpush.xpose.msra.mxu0 0.0
    %235 = vmatpush.xpose.msra.mxu0 0.0
    %236 = vmatpush.xpose.msra.mxu0 0.0
    %237 = vmatpush.xpose.msra.mxu0 0.0
    %238 = vmatpush.xpose.msra.mxu0 0.0
    %239 = vmatpush.xpose.msra.mxu0 0.0
    %240 = vmatpush.xpose.msra.mxu0 0.0
    %241 = vmatpush.xpose.msra.mxu0 0.0
    %242 = vmatpush.xpose.msra.mxu0 0.0
    %243 = vmatpush.xpose.msra.mxu0 %v226
    %244 = vmatmul.f32.gmra.mxu0 %v224
    %v245 = vpop.f32.mrf.mxu0
    %v246 = vadd.f32 0.0, %v245
    %247 = vdwg.mxu0
    %248 = vrot.lane.b32.xlu0 %v146, 96
    %v249 = vpop.permute.xlu0 %248
    %v250 = vsel %vm171, %v132, 0
    %v252 = vsel %vm171, %v249, 0
    %254 = vmatpush.xpose.msra.mxu0 0.0
    %255 = vmatpush.xpose.msra.mxu0 0.0
    %256 = vmatpush.xpose.msra.mxu0 0.0
    %257 = vmatpush.xpose.msra.mxu0 0.0
    %258 = vmatpush.xpose.msra.mxu0 0.0
    %259 = vmatpush.xpose.msra.mxu0 0.0
    %260 = vmatpush.xpose.msra.mxu0 0.0
    %261 = vmatpush.xpose.msra.mxu0 0.0
    %262 = vmatpush.xpose.msra.mxu0 0.0
    %263 = vmatpush.xpose.msra.mxu0 0.0
    %264 = vmatpush.xpose.msra.mxu0 0.0
    %265 = vmatpush.xpose.msra.mxu0 0.0
    %266 = vmatpush.xpose.msra.mxu0 0.0
    %267 = vmatpush.xpose.msra.mxu0 0.0
    %268 = vmatpush.xpose.msra.mxu0 0.0
    %269 = vmatpush.xpose.msra.mxu0 %v252
    %270 = vmatmul.f32.gmra.mxu0 %v250
    %v271 = vpop.f32.mrf.mxu0
    %v272 = vadd.f32 0.0, %v271
    %273 = vdwg.mxu0
    %274 = vrot.lane.b32.xlu0 %v148, 96
    %v275 = vpop.permute.xlu0 %274
    %v276 = vsel %vm171, %v134, 0
    %v278 = vsel %vm171, %v275, 0
    %280 = vmatpush.xpose.msra.mxu0 0.0
    %281 = vmatpush.xpose.msra.mxu0 0.0
    %282 = vmatpush.xpose.msra.mxu0 0.0
    %283 = vmatpush.xpose.msra.mxu0 0.0
    %284 = vmatpush.xpose.msra.mxu0 0.0
    %285 = vmatpush.xpose.msra.mxu0 0.0
    %286 = vmatpush.xpose.msra.mxu0 0.0
    %287 = vmatpush.xpose.msra.mxu0 0.0
    %288 = vmatpush.xpose.msra.mxu0 0.0
    %289 = vmatpush.xpose.msra.mxu0 0.0
    %290 = vmatpush.xpose.msra.mxu0 0.0
    %291 = vmatpush.xpose.msra.mxu0 0.0
    %292 = vmatpush.xpose.msra.mxu0 0.0
    %293 = vmatpush.xpose.msra.mxu0 0.0
    %294 = vmatpush.xpose.msra.mxu0 0.0
    %295 = vmatpush.xpose.msra.mxu0 %v278
    %296 = vmatmul.f32.gmra.mxu0 %v276
    %v297 = vpop.f32.mrf.mxu0
    %v298 = vadd.f32 0.0, %v297
    %299 = vdwg.mxu0
    %300 = vrot.lane.b32.xlu0 %v150, 96
    %v301 = vpop.permute.xlu0 %300
    %v302 = vsel %vm171, %v136, 0
    %v304 = vsel %vm171, %v301, 0
    %306 = vmatpush.xpose.msra.mxu0 0.0
    %307 = vmatpush.xpose.msra.mxu0 0.0
    %308 = vmatpush.xpose.msra.mxu0 0.0
    %309 = vmatpush.xpose.msra.mxu0 0.0
    %310 = vmatpush.xpose.msra.mxu0 0.0
    %311 = vmatpush.xpose.msra.mxu0 0.0
    %312 = vmatpush.xpose.msra.mxu0 0.0
    %313 = vmatpush.xpose.msra.mxu0 0.0
    %314 = vmatpush.xpose.msra.mxu0 0.0
    %315 = vmatpush.xpose.msra.mxu0 0.0
    %316 = vmatpush.xpose.msra.mxu0 0.0
    %317 = vmatpush.xpose.msra.mxu0 0.0
    %318 = vmatpush.xpose.msra.mxu0 0.0
    %319 = vmatpush.xpose.msra.mxu0 0.0
    %320 = vmatpush.xpose.msra.mxu0 0.0
    %321 = vmatpush.xpose.msra.mxu0 %v304
    %322 = vmatmul.f32.gmra.mxu0 %v302
    %v323 = vpop.f32.mrf.mxu0
    %v324 = vadd.f32 0.0, %v323
    %325 = vdwg.mxu0
    %326 = vrot.lane.b32.xlu0 %v152, 96
    %v327 = vpop.permute.xlu0 %326
    %v328 = vsel %vm171, %v138, 0
    %v330 = vsel %vm171, %v327, 0
    %332 = vmatpush.xpose.msra.mxu0 0.0
    %333 = vmatpush.xpose.msra.mxu0 0.0
    %334 = vmatpush.xpose.msra.mxu0 0.0
    %335 = vmatpush.xpose.msra.mxu0 0.0
    %336 = vmatpush.xpose.msra.mxu0 0.0
    %337 = vmatpush.xpose.msra.mxu0 0.0
    %338 = vmatpush.xpose.msra.mxu0 0.0
    %339 = vmatpush.xpose.msra.mxu0 0.0
    %340 = vmatpush.xpose.msra.mxu0 0.0
    %341 = vmatpush.xpose.msra.mxu0 0.0
    %342 = vmatpush.xpose.msra.mxu0 0.0
    %343 = vmatpush.xpose.msra.mxu0 0.0
    %344 = vmatpush.xpose.msra.mxu0 0.0
    %345 = vmatpush.xpose.msra.mxu0 0.0
    %346 = vmatpush.xpose.msra.mxu0 0.0
    %347 = vmatpush.xpose.msra.mxu0 %v330
    %348 = vmatmul.f32.gmra.mxu0 %v328
    %v349 = vpop.f32.mrf.mxu0
    %v350 = vadd.f32 0.0, %v349
    %351 = vdwg.mxu0
    %352 = vrot.lane.b32.xlu0 %v154, 96
    %v353 = vpop.permute.xlu0 %352
    %v354 = vsel %vm171, %v140, 0
    %v356 = vsel %vm171, %v353, 0
    %358 = vmatpush.xpose.msra.mxu0 0.0
    %359 = vmatpush.xpose.msra.mxu0 0.0
    %360 = vmatpush.xpose.msra.mxu0 0.0
    %361 = vmatpush.xpose.msra.mxu0 0.0
    %362 = vmatpush.xpose.msra.mxu0 0.0
    %363 = vmatpush.xpose.msra.mxu0 0.0
    %364 = vmatpush.xpose.msra.mxu0 0.0
    %365 = vmatpush.xpose.msra.mxu0 0.0
    %366 = vmatpush.xpose.msra.mxu0 0.0
    %367 = vmatpush.xpose.msra.mxu0 0.0
    %368 = vmatpush.xpose.msra.mxu0 0.0
    %369 = vmatpush.xpose.msra.mxu0 0.0
    %370 = vmatpush.xpose.msra.mxu0 0.0
    %371 = vmatpush.xpose.msra.mxu0 0.0
    %372 = vmatpush.xpose.msra.mxu0 0.0
    %373 = vmatpush.xpose.msra.mxu0 %v356
    %374 = vmatmul.f32.gmra.mxu0 %v354
    %v375 = vpop.f32.mrf.mxu0
    %v376 = vadd.f32 0.0, %v375
    %377 = vdwg.mxu0
    %v378 = vsel %vm171, %v194, -inf
    %379 = vmax.xlane.f32.xlu0 %v378
    %v380 = vpop.xlane.xlu0 %379
    %v381 = vsel %vm171, %v220, -inf
    %382 = vmax.xlane.f32.xlu0 %v381
    %v383 = vpop.xlane.xlu0 %382
    %v384 = vsel %vm171, %v246, -inf
    %385 = vmax.xlane.f32.xlu0 %v384
    %v386 = vpop.xlane.xlu0 %385
    %v387 = vsel %vm171, %v272, -inf
    %388 = vmax.xlane.f32.xlu0 %v387
    %v389 = vpop.xlane.xlu0 %388
    %v390 = vsel %vm171, %v298, -inf
    %391 = vmax.xlane.f32.xlu0 %v390
    %v392 = vpop.xlane.xlu0 %391
    %v393 = vsel %vm171, %v324, -inf
    %394 = vmax.xlane.f32.xlu0 %v393
    %v395 = vpop.xlane.xlu0 %394
    %v396 = vsel %vm171, %v350, -inf
    %397 = vmax.xlane.f32.xlu0 %v396
    %v398 = vpop.xlane.xlu0 %397
    %v399 = vsel %vm171, %v376, -inf
    %400 = vmax.xlane.f32.xlu0 %v399
    %v401 = vpop.xlane.xlu0 %400
    %v402 = vsub.f32 %v194, %v380
    %v403 = vsub.f32 %v220, %v383
    %v404 = vsub.f32 %v246, %v386
    %v405 = vsub.f32 %v272, %v389
    %v406 = vsub.f32 %v298, %v392
    %v407 = vsub.f32 %v324, %v395
    %v408 = vsub.f32 %v350, %v398
    %v409 = vsub.f32 %v376, %v401
    %v410 = vmul.f32 %v402, 1.442695
    %v411 = vpow.pop %v410
    %v412 = vmul.f32 %v403, 1.442695
    %v413 = vpow.pop %v412
    %v414 = vmul.f32 %v404, 1.442695
    %v415 = vpow.pop %v414
    %v416 = vmul.f32 %v405, 1.442695
    %v417 = vpow.pop %v416
    %v418 = vmul.f32 %v406, 1.442695
    %v419 = vpow.pop %v418
    %v420 = vmul.f32 %v407, 1.442695
    %v421 = vpow.pop %v420
    %v422 = vmul.f32 %v408, 1.442695
    %v423 = vpow.pop %v422
    %v424 = vmul.f32 %v409, 1.442695
    %v425 = vpow.pop %v424
    %v426 = vsel %vm171, %v411, 0.0
    %427 = vadd.xlane.f32.xlu0 %v426
    %v428 = vpop.xlane.xlu0 %427
    %v429 = vsel %vm171, %v413, 0.0
    %430 = vadd.xlane.f32.xlu0 %v429
    %v431 = vpop.xlane.xlu0 %430
    %v432 = vsel %vm171, %v415, 0.0
    %433 = vadd.xlane.f32.xlu0 %v432
    %v434 = vpop.xlane.xlu0 %433
    %v435 = vsel %vm171, %v417, 0.0
    %436 = vadd.xlane.f32.xlu0 %v435
    %v437 = vpop.xlane.xlu0 %436
    %v438 = vsel %vm171, %v419, 0.0
    %439 = vadd.xlane.f32.xlu0 %v438
    %v440 = vpop.xlane.xlu0 %439
    %v441 = vsel %vm171, %v421, 0.0
    %442 = vadd.xlane.f32.xlu0 %v441
    %v443 = vpop.xlane.xlu0 %442
    %v444 = vsel %vm171, %v423, 0.0
    %445 = vadd.xlane.f32.xlu0 %v444
    %v446 = vpop.xlane.xlu0 %445
    %v447 = vsel %vm171, %v425, 0.0
    %448 = vadd.xlane.f32.xlu0 %v447
    %v449 = vpop.xlane.xlu0 %448
    %v450 = vrcp.pop %v428
    %v451 = vmul.f32 %v428, %v450
    %v452 = vsub.f32 1.0, %v451
    %v453 = vmul.f32 %v450, %v452
    %v454 = vadd.f32 %v450, %v453
    %vm455 = vweird.f32 %v428
    %vm456 = vweird.f32 %v450
    %vm457 = vmor %vm455, %vm456
    %v458 = vsel %vm457, %v450, %v454
    %v459 = vand.u32 2147483647, %v428
    %vm460 = vcmp.eq.f32.partialorder %v459, 8.507059e+37
    %v461 = vand.u32 %v428, 2147483648
    %v462 = vor.u32 1.1754944e-38, %v461
    %v463 = vsel %vm460, %v462, %v458
    %v464 = vrcp.pop %v431
    %v465 = vmul.f32 %v431, %v464
    %v466 = vsub.f32 1.0, %v465
    %v467 = vmul.f32 %v464, %v466
    %v468 = vadd.f32 %v464, %v467
    %vm469 = vweird.f32 %v431
    %vm470 = vweird.f32 %v464
    %vm471 = vmor %vm469, %vm470
    %v472 = vsel %vm471, %v464, %v468
    %v473 = vand.u32 2147483647, %v431
    %vm474 = vcmp.eq.f32.partialorder %v473, 8.507059e+37
    %v475 = vand.u32 %v431, 2147483648
    %v476 = vor.u32 1.1754944e-38, %v475
    %v477 = vsel %vm474, %v476, %v472
    %v478 = vrcp.pop %v434
    %v479 = vmul.f32 %v434, %v478
    %v480 = vsub.f32 1.0, %v479
    %v481 = vmul.f32 %v478, %v480
    %v482 = vadd.f32 %v478, %v481
    %vm483 = vweird.f32 %v434
    %vm484 = vweird.f32 %v478
    %vm485 = vmor %vm483, %vm484
    %v486 = vsel %vm485, %v478, %v482
    %v487 = vand.u32 2147483647, %v434
    %vm488 = vcmp.eq.f32.partialorder %v487, 8.507059e+37
    %v489 = vand.u32 %v434, 2147483648
    %v490 = vor.u32 1.1754944e-38, %v489
    %v491 = vsel %vm488, %v490, %v486
    %v492 = vrcp.pop %v437
    %v493 = vmul.f32 %v437, %v492
    %v494 = vsub.f32 1.0, %v493
    %v495 = vmul.f32 %v492, %v494
    %v496 = vadd.f32 %v492, %v495
    %vm497 = vweird.f32 %v437
    %vm498 = vweird.f32 %v492
    %vm499 = vmor %vm497, %vm498
    %v500 = vsel %vm499, %v492, %v496
    %v501 = vand.u32 2147483647, %v437
    %vm502 = vcmp.eq.f32.partialorder %v501, 8.507059e+37
    %v503 = vand.u32 %v437, 2147483648
    %v504 = vor.u32 1.1754944e-38, %v503
    %v505 = vsel %vm502, %v504, %v500
    %v506 = vrcp.pop %v440
    %v507 = vmul.f32 %v440, %v506
    %v508 = vsub.f32 1.0, %v507
    %v509 = vmul.f32 %v506, %v508
    %v510 = vadd.f32 %v506, %v509
    %vm511 = vweird.f32 %v440
    %vm512 = vweird.f32 %v506
    %vm513 = vmor %vm511, %vm512
    %v514 = vsel %vm513, %v506, %v510
    %v515 = vand.u32 2147483647, %v440
    %vm516 = vcmp.eq.f32.partialorder %v515, 8.507059e+37
    %v517 = vand.u32 %v440, 2147483648
    %v518 = vor.u32 1.1754944e-38, %v517
    %v519 = vsel %vm516, %v518, %v514
    %v520 = vrcp.pop %v443
    %v521 = vmul.f32 %v443, %v520
    %v522 = vsub.f32 1.0, %v521
    %v523 = vmul.f32 %v520, %v522
    %v524 = vadd.f32 %v520, %v523
    %vm525 = vweird.f32 %v443
    %vm526 = vweird.f32 %v520
    %vm527 = vmor %vm525, %vm526
    %v528 = vsel %vm527, %v520, %v524
    %v529 = vand.u32 2147483647, %v443
    %vm530 = vcmp.eq.f32.partialorder %v529, 8.507059e+37
    %v531 = vand.u32 %v443, 2147483648
    %v532 = vor.u32 1.1754944e-38, %v531
    %v533 = vsel %vm530, %v532, %v528
    %v534 = vrcp.pop %v446
    %v535 = vmul.f32 %v446, %v534
    %v536 = vsub.f32 1.0, %v535
    %v537 = vmul.f32 %v534, %v536
    %v538 = vadd.f32 %v534, %v537
    %vm539 = vweird.f32 %v446
    %vm540 = vweird.f32 %v534
    %vm541 = vmor %vm539, %vm540
    %v542 = vsel %vm541, %v534, %v538
    %v543 = vand.u32 2147483647, %v446
    %vm544 = vcmp.eq.f32.partialorder %v543, 8.507059e+37
    %v545 = vand.u32 %v446, 2147483648
    %v546 = vor.u32 1.1754944e-38, %v545
    %v547 = vsel %vm544, %v546, %v542
    %v548 = vrcp.pop %v449
    %v549 = vmul.f32 %v449, %v548
    %v550 = vsub.f32 1.0, %v549
    %v551 = vmul.f32 %v548, %v550
    %v552 = vadd.f32 %v548, %v551
    %vm553 = vweird.f32 %v449
    %vm554 = vweird.f32 %v548
    %vm555 = vmor %vm553, %vm554
    %v556 = vsel %vm555, %v548, %v552
    %v557 = vand.u32 2147483647, %v449
    %vm558 = vcmp.eq.f32.partialorder %v557, 8.507059e+37
    %v559 = vand.u32 %v449, 2147483648
    %v560 = vor.u32 1.1754944e-38, %v559
    %v561 = vsel %vm558, %v560, %v556
    %v562 = vmul.f32 %v411, %v463
    %v563 = vmul.f32 %v413, %v477
    %v564 = vmul.f32 %v415, %v491
    %v565 = vmul.f32 %v417, %v505
    %v566 = vmul.f32 %v419, %v519
    %v567 = vmul.f32 %v421, %v533
    %v568 = vmul.f32 %v423, %v547
    %v569 = vmul.f32 %v425, %v561
    %570 = vrot.lane.b32.xlu0 %v125, 64
    %v571 = vpop.permute.xlu0 %570
    %v574 = vsel %vm171, %v562, 0
    %576 = vmatpush.msra.mxu0 0.0
    %577 = vmatpush.msra.mxu0 0.0
    %578 = vmatpush.msra.mxu0 0.0
    %579 = vmatpush.msra.mxu0 0.0
    %580 = vmatpush.msra.mxu0 0.0
    %581 = vmatpush.msra.mxu0 0.0
    %582 = vmatpush.msra.mxu0 0.0
    %583 = vmatpush.msra.mxu0 0.0
    %584 = vmatpush.msra.mxu0 0.0
    %585 = vmatpush.msra.mxu0 0.0
    %586 = vmatpush.msra.mxu0 0.0
    %587 = vmatpush.msra.mxu0 0.0
    %588 = vmatpush.msra.mxu0 0.0
    %589 = vmatpush.msra.mxu0 0.0
    %590 = vmatpush.msra.mxu0 0.0
    %591 = vmatpush.msra.mxu0 %v571
    %592 = vmatmul.f32.gmra.mxu0 %v574
    %v593 = vpop.f32.mrf.mxu0
    %v594 = vadd.f32 0.0, %v593
    %595 = vdwg.mxu0
    %596 = vrot.lane.b32.xlu0 %v126, 64
    %v597 = vpop.permute.xlu0 %596
    %v600 = vsel %vm171, %v563, 0
    %602 = vmatpush.msra.mxu0 0.0
    %603 = vmatpush.msra.mxu0 0.0
    %604 = vmatpush.msra.mxu0 0.0
    %605 = vmatpush.msra.mxu0 0.0
    %606 = vmatpush.msra.mxu0 0.0
    %607 = vmatpush.msra.mxu0 0.0
    %608 = vmatpush.msra.mxu0 0.0
    %609 = vmatpush.msra.mxu0 0.0
    %610 = vmatpush.msra.mxu0 0.0
    %611 = vmatpush.msra.mxu0 0.0
    %612 = vmatpush.msra.mxu0 0.0
    %613 = vmatpush.msra.mxu0 0.0
    %614 = vmatpush.msra.mxu0 0.0
    %615 = vmatpush.msra.mxu0 0.0
    %616 = vmatpush.msra.mxu0 0.0
    %617 = vmatpush.msra.mxu0 %v597
    %618 = vmatmul.f32.gmra.mxu0 %v600
    %v619 = vpop.f32.mrf.mxu0
    %v620 = vadd.f32 0.0, %v619
    %621 = vdwg.mxu0
    %622 = vrot.lane.b32.xlu0 %v158, 64
    %v623 = vpop.permute.xlu0 %622
    %v626 = vsel %vm171, %v564, 0
    %628 = vmatpush.msra.mxu0 0.0
    %629 = vmatpush.msra.mxu0 0.0
    %630 = vmatpush.msra.mxu0 0.0
    %631 = vmatpush.msra.mxu0 0.0
    %632 = vmatpush.msra.mxu0 0.0
    %633 = vmatpush.msra.mxu0 0.0
    %634 = vmatpush.msra.mxu0 0.0
    %635 = vmatpush.msra.mxu0 0.0
    %636 = vmatpush.msra.mxu0 0.0
    %637 = vmatpush.msra.mxu0 0.0
    %638 = vmatpush.msra.mxu0 0.0
    %639 = vmatpush.msra.mxu0 0.0
    %640 = vmatpush.msra.mxu0 0.0
    %641 = vmatpush.msra.mxu0 0.0
    %642 = vmatpush.msra.mxu0 0.0
    %643 = vmatpush.msra.mxu0 %v623
    %644 = vmatmul.f32.gmra.mxu0 %v626
    %v645 = vpop.f32.mrf.mxu0
    %v646 = vadd.f32 0.0, %v645
    %647 = vdwg.mxu0
    %648 = vrot.lane.b32.xlu0 %v160, 64
    %v649 = vpop.permute.xlu0 %648
    %v652 = vsel %vm171, %v565, 0
    %654 = vmatpush.msra.mxu0 0.0
    %655 = vmatpush.msra.mxu0 0.0
    %656 = vmatpush.msra.mxu0 0.0
    %657 = vmatpush.msra.mxu0 0.0
    %658 = vmatpush.msra.mxu0 0.0
    %659 = vmatpush.msra.mxu0 0.0
    %660 = vmatpush.msra.mxu0 0.0
    %661 = vmatpush.msra.mxu0 0.0
    %662 = vmatpush.msra.mxu0 0.0
    %663 = vmatpush.msra.mxu0 0.0
    %664 = vmatpush.msra.mxu0 0.0
    %665 = vmatpush.msra.mxu0 0.0
    %666 = vmatpush.msra.mxu0 0.0
    %667 = vmatpush.msra.mxu0 0.0
    %668 = vmatpush.msra.mxu0 0.0
    %669 = vmatpush.msra.mxu0 %v649
    %670 = vmatmul.f32.gmra.mxu0 %v652
    %v671 = vpop.f32.mrf.mxu0
    %v672 = vadd.f32 0.0, %v671
    %673 = vdwg.mxu0
    %674 = vrot.lane.b32.xlu0 %v162, 64
    %v675 = vpop.permute.xlu0 %674
    %v678 = vsel %vm171, %v566, 0
    %680 = vmatpush.msra.mxu0 0.0
    %681 = vmatpush.msra.mxu0 0.0
    %682 = vmatpush.msra.mxu0 0.0
    %683 = vmatpush.msra.mxu0 0.0
    %684 = vmatpush.msra.mxu0 0.0
    %685 = vmatpush.msra.mxu0 0.0
    %686 = vmatpush.msra.mxu0 0.0
    %687 = vmatpush.msra.mxu0 0.0
    %688 = vmatpush.msra.mxu0 0.0
    %689 = vmatpush.msra.mxu0 0.0
    %690 = vmatpush.msra.mxu0 0.0
    %691 = vmatpush.msra.mxu0 0.0
    %692 = vmatpush.msra.mxu0 0.0
    %693 = vmatpush.msra.mxu0 0.0
    %694 = vmatpush.msra.mxu0 0.0
    %695 = vmatpush.msra.mxu0 %v675
    %696 = vmatmul.f32.gmra.mxu0 %v678
    %v697 = vpop.f32.mrf.mxu0
    %v698 = vadd.f32 0.0, %v697
    %699 = vdwg.mxu0
    %700 = vrot.lane.b32.xlu0 %v164, 64
    %v701 = vpop.permute.xlu0 %700
    %v704 = vsel %vm171, %v567, 0
    %706 = vmatpush.msra.mxu0 0.0
    %707 = vmatpush.msra.mxu0 0.0
    %708 = vmatpush.msra.mxu0 0.0
    %709 = vmatpush.msra.mxu0 0.0
    %710 = vmatpush.msra.mxu0 0.0
    %711 = vmatpush.msra.mxu0 0.0
    %712 = vmatpush.msra.mxu0 0.0
    %713 = vmatpush.msra.mxu0 0.0
    %714 = vmatpush.msra.mxu0 0.0
    %715 = vmatpush.msra.mxu0 0.0
    %716 = vmatpush.msra.mxu0 0.0
    %717 = vmatpush.msra.mxu0 0.0
    %718 = vmatpush.msra.mxu0 0.0
    %719 = vmatpush.msra.mxu0 0.0
    %720 = vmatpush.msra.mxu0 0.0
    %721 = vmatpush.msra.mxu0 %v701
    %722 = vmatmul.f32.gmra.mxu0 %v704
    %v723 = vpop.f32.mrf.mxu0
    %v724 = vadd.f32 0.0, %v723
    %725 = vdwg.mxu0
    %726 = vrot.lane.b32.xlu0 %v166, 64
    %v727 = vpop.permute.xlu0 %726
    %v730 = vsel %vm171, %v568, 0
    %732 = vmatpush.msra.mxu0 0.0
    %733 = vmatpush.msra.mxu0 0.0
    %734 = vmatpush.msra.mxu0 0.0
    %735 = vmatpush.msra.mxu0 0.0
    %736 = vmatpush.msra.mxu0 0.0
    %737 = vmatpush.msra.mxu0 0.0
    %738 = vmatpush.msra.mxu0 0.0
    %739 = vmatpush.msra.mxu0 0.0
    %740 = vmatpush.msra.mxu0 0.0
    %741 = vmatpush.msra.mxu0 0.0
    %742 = vmatpush.msra.mxu0 0.0
    %743 = vmatpush.msra.mxu0 0.0
    %744 = vmatpush.msra.mxu0 0.0
    %745 = vmatpush.msra.mxu0 0.0
    %746 = vmatpush.msra.mxu0 0.0
    %747 = vmatpush.msra.mxu0 %v727
    %748 = vmatmul.f32.gmra.mxu0 %v730
    %v749 = vpop.f32.mrf.mxu0
    %v750 = vadd.f32 0.0, %v749
    %751 = vdwg.mxu0
    %752 = vrot.lane.b32.xlu0 %v168, 64
    %v753 = vpop.permute.xlu0 %752
    %v756 = vsel %vm171, %v569, 0
    %758 = vmatpush.msra.mxu0 0.0
    %759 = vmatpush.msra.mxu0 0.0
    %760 = vmatpush.msra.mxu0 0.0
    %761 = vmatpush.msra.mxu0 0.0
    %762 = vmatpush.msra.mxu0 0.0
    %763 = vmatpush.msra.mxu0 0.0
    %764 = vmatpush.msra.mxu0 0.0
    %765 = vmatpush.msra.mxu0 0.0
    %766 = vmatpush.msra.mxu0 0.0
    %767 = vmatpush.msra.mxu0 0.0
    %768 = vmatpush.msra.mxu0 0.0
    %769 = vmatpush.msra.mxu0 0.0
    %770 = vmatpush.msra.mxu0 0.0
    %771 = vmatpush.msra.mxu0 0.0
    %772 = vmatpush.msra.mxu0 0.0
    %773 = vmatpush.msra.mxu0 %v753
    %774 = vmatmul.f32.gmra.mxu0 %v756
    %v775 = vpop.f32.mrf.mxu0
    %v776 = vadd.f32 0.0, %v775
    %777 = vdwg.mxu0
    %780 = vrot.lane.b32.xlu0 %v646, 8
    %v781 = vpop.permute.xlu0 %780
    %782 = vrot.lane.b32.xlu0 %v672, 8
    %v783 = vpop.permute.xlu0 %782
    %788 = vrot.lane.b32.xlu0 %v698, 16
    %v789 = vpop.permute.xlu0 %788
    %790 = vrot.lane.b32.xlu0 %v724, 16
    %v791 = vpop.permute.xlu0 %790
    %796 = vrot.lane.b32.xlu0 %v750, 24
    %v797 = vpop.permute.xlu0 %796
    %798 = vrot.lane.b32.xlu0 %v776, 24
    %v799 = vpop.permute.xlu0 %798
    %v802 = vsel %vm171, %v594, %v781
    %v803 = vsel %vm171, %v620, %v783
    %vm804 = vcmask 130048
    %v805 = vsel %vm804, %v802, %v789
    %v806 = vsel %vm804, %v803, %v791
    %vm807 = vcmask 195584
    %v808 = vsel %vm807, %v805, %v797
    %v809 = vsel %vm807, %v806, %v799
    %v810 = vld [vmem:[#allocation2 + $0xa3] sm:$0x1]
    %v811 = vperm.slane %v810, 0
    %v813 = vsel %vm53, %v808, 0
    %v816 = vsel %vm53, %v809, 0
    %818 = vmatpush.msra.mxu0 0.0
    %819 = vmatpush.msra.mxu0 0.0
    %820 = vmatpush.msra.mxu0 0.0
    %821 = vmatpush.msra.mxu0 0.0
    %822 = vmatpush.msra.mxu0 0.0
    %823 = vmatpush.msra.mxu0 0.0
    %824 = vmatpush.msra.mxu0 0.0
    %825 = vmatpush.msra.mxu0 0.0
    %826 = vmatpush.msra.mxu0 0.0
    %827 = vmatpush.msra.mxu0 0.0
    %828 = vmatpush.msra.mxu0 0.0
    %829 = vmatpush.msra.mxu0 0.0
    %830 = vmatpush.msra.mxu0 %v34
    %831 = vmatpush.msra.mxu0 %v33
    %832 = vmatpush.msra.mxu0 %v32
    %833 = vmatpush.msra.mxu0 %v31
    %834 = vmatmul.f32.gmra.mxu0 %v813
    %v835 = vpop.f32.mrf.mxu0
    %v836 = vadd.f32 %v811, %v835
    %837 = vmatmul.f32.gmra.mxu0 %v816
    %v838 = vpop.f32.mrf.mxu0
    %v839 = vadd.f32 %v811, %v838
    %840 = vdwg.mxu0
    %v841 = vadd.f32 %v51, %v836
    %v842 = vadd.f32 %v52, %v839
    %v843 = vld [vmem:[#allocation2 + $0xa6] sm:$0x1]
    %v844 = vld [vmem:[#allocation2 + $0xa7] sm:$0x1]
    %v845 = vsel %vm53, %v841, 0.0
    %846 = vadd.xlane.f32.xlu0 %v845
    %v847 = vpop.xlane.xlu0 %846
    %v848 = vsel %vm53, %v842, 0.0
    %849 = vadd.xlane.f32.xlu0 %v848
    %v850 = vpop.xlane.xlu0 %849
    %v851 = vrcp.pop 32.0
    %v852 = vmul.f32 32.0, %v851
    %v853 = vsub.f32 1.0, %v852
    %v854 = vmul.f32 %v851, %v853
    %v855 = vadd.f32 %v851, %v854
    %vm856 = vweird.f32 %v851
    %v857 = vsel %vm856, %v851, %v855
    %v858 = vmul.f32 %v847, %v857
    %v859 = vmul.f32 %v850, %v857
    %v860 = vsub.f32 %v841, %v858
    %v861 = vsub.f32 %v842, %v859
    %v862 = vmul.f32 %v860, %v860
    %v863 = vmul.f32 %v861, %v861
    %v864 = vsel %vm53, %v862, 0.0
    %865 = vadd.xlane.f32.xlu0 %v864
    %v866 = vpop.xlane.xlu0 %865
    %v867 = vsel %vm53, %v863, 0.0
    %868 = vadd.xlane.f32.xlu0 %v867
    %v869 = vpop.xlane.xlu0 %868
    %v870 = vmul.f32 %v866, %v857
    %v871 = vmul.f32 %v869, %v857
    %v872 = vadd.f32 %v870, 1e-05
    %v873 = vadd.f32 %v871, 1e-05
    %v874 = vrsqrt.pop %v872
    %v875 = vmul.f32 %v874, %v872
    %v876 = vmul.f32 %v875, %v874
    %v877 = vmul.f32 0.5, %v876
    %v878 = vsub.f32 1.5, %v877
    %v879 = vmul.f32 %v874, %v878
    %vm880 = vweird.f32 %v872
    %vm881 = vweird.f32 %v874
    %vm882 = vmor %vm880, %vm881
    %v883 = vsel %vm882, %v874, %v879
    %v884 = vrsqrt.pop %v873
    %v885 = vmul.f32 %v884, %v873
    %v886 = vmul.f32 %v885, %v884
    %v887 = vmul.f32 0.5, %v886
    %v888 = vsub.f32 1.5, %v887
    %v889 = vmul.f32 %v884, %v888
    %vm890 = vweird.f32 %v873
    %vm891 = vweird.f32 %v884
    %vm892 = vmor %vm890, %vm891
    %v893 = vsel %vm892, %v884, %v889
    %v894 = vmul.f32 %v860, %v883
    %v895 = vmul.f32 %v861, %v893
    %v896 = vperm.slane %v843, 0
    %v897 = vmul.f32 %v894, %v896
    %v898 = vmul.f32 %v895, %v896
    %v899 = vperm.slane %v844, 0
    %v900 = vadd.f32 %v897, %v899
    %v901 = vadd.f32 %v898, %v899
    %v902 = vld [vmem:[#allocation2 + $0xa4] sm:$0x1]
    %v903 = vperm.slane %v902, 0
    %v905 = vsel %vm53, %v900, 0
    %v908 = vsel %vm53, %v901, 0
    %910 = vmatpush.msra.mxu0 0.0
    %911 = vmatpush.msra.mxu0 0.0
    %912 = vmatpush.msra.mxu0 0.0
    %913 = vmatpush.msra.mxu0 0.0
    %914 = vmatpush.msra.mxu0 0.0
    %915 = vmatpush.msra.mxu0 0.0
    %916 = vmatpush.msra.mxu0 0.0
    %917 = vmatpush.msra.mxu0 0.0
    %918 = vmatpush.msra.mxu0 0.0
    %919 = vmatpush.msra.mxu0 0.0
    %920 = vmatpush.msra.mxu0 0.0
    %921 = vmatpush.msra.mxu0 0.0
    %922 = vmatpush.msra.mxu0 %v38
    %923 = vmatpush.msra.mxu0 %v37
    %924 = vmatpush.msra.mxu0 %v36
    %925 = vmatpush.msra.mxu0 %v35
    %926 = vmatmul.f32.gmra.mxu0 %v905
    %v927 = vpop.f32.mrf.mxu0
    %v928 = vadd.f32 %v903, %v927
    %929 = vmatmul.f32.gmra.mxu0 %v908
    %v930 = vpop.f32.mrf.mxu0
    %v931 = vadd.f32 %v903, %v930
    %932 = vdwg.mxu0
    %v933 = vmax.f32 %v928, 0.0
    %v934 = vmax.f32 %v931, 0.0
    %v935 = vld [vmem:[#allocation2 + $0xa5] sm:$0x1]
    %v936 = vperm.slane %v935, 0
    %vm937 = vcmask 523264
    %v939 = vsel %vm937, %v933, 0
    %v942 = vsel %vm937, %v934, 0
    %944 = vmatpush.msra.mxu0 0.0
    %945 = vmatpush.msra.mxu0 0.0
    %946 = vmatpush.msra.mxu0 0.0
    %947 = vmatpush.msra.mxu0 0.0
    %948 = vmatpush.msra.mxu0 0.0
    %949 = vmatpush.msra.mxu0 0.0
    %950 = vmatpush.msra.mxu0 0.0
    %951 = vmatpush.msra.mxu0 0.0
    %952 = vmatpush.msra.mxu0 %v46
    %953 = vmatpush.msra.mxu0 %v45
    %954 = vmatpush.msra.mxu0 %v44
    %955 = vmatpush.msra.mxu0 %v43
    %956 = vmatpush.msra.mxu0 %v42
    %957 = vmatpush.msra.mxu0 %v41
    %958 = vmatpush.msra.mxu0 %v40
    %959 = vmatpush.msra.mxu0 %v39
    %960 = vmatmul.f32.gmra.mxu0 %v939
    %v961 = vpop.f32.mrf.mxu0
    %v962 = vadd.f32 %v936, %v961
    %963 = vmatmul.f32.gmra.mxu0 %v942
    %v964 = vpop.f32.mrf.mxu0
    %v965 = vadd.f32 %v936, %v964
    %966 = vdwg.mxu0
    %v967 = vadd.f32 %v900, %v962
    %v968 = vadd.f32 %v901, %v965
    %v969 = vld [vmem:[#allocation2 + $0xa8] sm:$0x1]
    %v970 = vld [vmem:[#allocation2 + $0xa9] sm:$0x1]
    %v971 = vsel %vm53, %v967, 0.0
    %972 = vadd.xlane.f32.xlu0 %v971
    %v973 = vpop.xlane.xlu0 %972
    %v974 = vsel %vm53, %v968, 0.0
    %975 = vadd.xlane.f32.xlu0 %v974
    %v976 = vpop.xlane.xlu0 %975
    %v977 = vmul.f32 %v973, %v857
    %v978 = vmul.f32 %v976, %v857
    %v979 = vsub.f32 %v967, %v977
    %v980 = vsub.f32 %v968, %v978
    %v981 = vmul.f32 %v979, %v979
    %v982 = vmul.f32 %v980, %v980
    %v983 = vsel %vm53, %v981, 0.0
    %984 = vadd.xlane.f32.xlu0 %v983
    %v985 = vpop.xlane.xlu0 %984
    %v986 = vsel %vm53, %v982, 0.0
    %987 = vadd.xlane.f32.xlu0 %v986
    %v988 = vpop.xlane.xlu0 %987
    %v989 = vmul.f32 %v985, %v857
    %v990 = vmul.f32 %v988, %v857
    %v991 = vadd.f32 %v989, 1e-05
    %v992 = vadd.f32 %v990, 1e-05
    %v993 = vrsqrt.pop %v991
    %v994 = vmul.f32 %v993, %v991
    %v995 = vmul.f32 %v994, %v993
    %v996 = vmul.f32 0.5, %v995
    %v997 = vsub.f32 1.5, %v996
    %v998 = vmul.f32 %v993, %v997
    %vm999 = vweird.f32 %v991
    %vm1000 = vweird.f32 %v993
    %vm1001 = vmor %vm999, %vm1000
    %v1002 = vsel %vm1001, %v993, %v998
    %v1003 = vrsqrt.pop %v992
    %v1004 = vmul.f32 %v1003, %v992
    %v1005 = vmul.f32 %v1004, %v1003
    %v1006 = vmul.f32 0.5, %v1005
    %v1007 = vsub.f32 1.5, %v1006
    %v1008 = vmul.f32 %v1003, %v1007
    %vm1009 = vweird.f32 %v992
    %vm1010 = vweird.f32 %v1003
    %vm1011 = vmor %vm1009, %vm1010
    %v1012 = vsel %vm1011, %v1003, %v1008
    %v1013 = vmul.f32 %v979, %v1002
    %v1014 = vmul.f32 %v980, %v1012
    %v1015 = vperm.slane %v969, 0
    %v1016 = vmul.f32 %v1013, %v1015
    %v1017 = vmul.f32 %v1014, %v1015
    %v1018 = vperm.slane %v970, 0
    %v1019 = vadd.f32 %v1016, %v1018
    %v1020 = vadd.f32 %v1017, %v1018
    %1021 = vst.msk [vmem:[%s2] sm:$0xff] %vm53, %v1019
    %1022 = vst.msk [vmem:[%s2 + $0x8] sm:$0xff] %vm53, %v1020
    // Predicated region
    $region14: #{transformer_encoder_layer_qkv.1} parent=1 // pred_check
      _
    $region15: #{transformer_encoder_layer_qkv.1} parent=1 // pred_check_branch
      %1024 = sbr.rel (0) target = $region17
    $region16: #{transformer_encoder_layer_qkv.1} parent=1 // pred_region
      _
    $region17: #{transformer_encoder_layer_qkv.1} parent=1 // pred_fallthru
      _
    // Predicated region
    $region18: #{transformer_encoder_layer_qkv.1} parent=1 // pred_check
      _
    $region19: #{transformer_encoder_layer_qkv.1} parent=1 // pred_check_branch
      %1026 = sbr.rel (0) target = $region21
    $region20: #{transformer_encoder_layer_qkv.1} parent=1 // pred_region
      _
    $region21: #{transformer_encoder_layer_qkv.1} parent=1 // pred_fallthru
      _
    %1027 = vsyncpa [#allocation3], 1

</llo_original>
